<compile_context>
chip_gen: v6e
topology: v6e:2x2x1
jax: 0.10.0
libtpu: 0.0.40
codegen_flags: <defaults>
</compile_context>

<pallas_src>
import functools
import math

import jax
import jax.numpy as jnp
from jax import lax
from jax.experimental import pallas as pl
from jax.experimental.pallas import tpu as pltpu

_NORM_EPS = 1e-12  # torch.nn.functional.normalize default eps


def _arcface_kernel(feat_ref, w_ref, label_ref, out_ref, *,
                    tile_c, s, cos_m, sin_m, th, mm, easy_margin):
    # feat_ref : (TILE_B, D)     input features (native dtype, cast here)
    # w_ref    : (TILE_C, D)     class-weight rows
    # label_ref: (TILE_B, 1)     int32 target class per row
    # out_ref  : (TILE_B, TILE_C) logits, classes on the lane axis (lane-dense)
    f = feat_ref[...].astype(jnp.float32)
    w = w_ref[...].astype(jnp.float32)

    # Row-wise L2 normalization: x / max(||x||, eps)  (matches F.normalize).
    f_norm = jnp.sqrt(jnp.sum(f * f, axis=-1, keepdims=True))
    w_norm = jnp.sqrt(jnp.sum(w * w, axis=-1, keepdims=True))
    fn = f * pl.reciprocal(jnp.maximum(f_norm, _NORM_EPS))
    wn = w * pl.reciprocal(jnp.maximum(w_norm, _NORM_EPS))

    # cosine = fn @ wn.T on the MXU, f32 accumulation (contract over D).
    cosine = lax.dot_general(fn, wn, (((1,), (1,)), ((), ())),
                             preferred_element_type=jnp.float32)

    sine = jnp.sqrt(jnp.clip(1.0 - cosine * cosine, 0.0, 1.0))
    phi = cosine * cos_m - sine * sin_m
    if easy_margin:
        phi = jnp.where(cosine > 0.0, phi, cosine)
    else:
        phi = jnp.where(cosine > th, phi, cosine - mm)

    # one_hot: global class index == label (replaces torch's scatter_).
    col = (pl.program_id(1) * tile_c
           + lax.broadcasted_iota(jnp.int32, cosine.shape, 1))
    one_hot = col == label_ref[...]                 # (TILE_B, TILE_C) bool

    out_ref[...] = (jnp.where(one_hot, phi, cosine) * s).astype(out_ref.dtype)


def _pick_tile(n, target, align):
    """Largest multiple of `align` that divides n and is <= target; else n."""
    if n <= target or n % align != 0:
        return n
    t = (target // align) * align
    while t >= align:
        if n % t == 0:
            return t
        t -= align
    return n


def arcface(feature, weight, label, *, s=30.0, m=0.5, easy_margin=False,
            tile_b=None, tile_c=None):
    """feature: (B, D), weight: (C, D), label: (B,) int. Returns (B, C) f32."""
    B, D = feature.shape
    C, D2 = weight.shape
    assert D == D2
    # Generation-safe tiles (kept small enough for v7x's scoped VMEM; D stays
    # whole inside each tile so the row reduction never needs a K grid axis).
    # TODO(synk): add a D ("arbitrary") grid axis + scratch accumulator if D
    # ever exceeds what fits in one VMEM tile.
    if tile_b is None:
        tile_b = _pick_tile(B, 256, 8)
    if tile_c is None:
        tile_c = _pick_tile(C, 512, 128)

    label2d = label.astype(jnp.int32).reshape(B, 1)

    kernel = functools.partial(
        _arcface_kernel, tile_c=tile_c, s=float(s),
        cos_m=math.cos(m), sin_m=math.sin(m),
        th=math.cos(math.pi - m), mm=math.sin(math.pi - m) * m,
        easy_margin=easy_margin)

    grid = (B // tile_b, C // tile_c)
    return pl.pallas_call(
        kernel,
        out_shape=jax.ShapeDtypeStruct((B, C), jnp.float32),
        grid=grid,
        in_specs=[
            pl.BlockSpec((tile_b, D), lambda i, j: (i, 0)),   # feature
            pl.BlockSpec((tile_c, D), lambda i, j: (j, 0)),   # weight
            pl.BlockSpec((tile_b, 1), lambda i, j: (i, 0)),   # label
        ],
        out_specs=pl.BlockSpec((tile_b, tile_c), lambda i, j: (i, j)),
        compiler_params=pltpu.CompilerParams(
            dimension_semantics=("parallel", "parallel")),
    )(feature, weight, label2d)


def _reference(feature, weight, label, *, s, m, easy_margin):
    fn = feature / jnp.maximum(
        jnp.linalg.norm(feature, axis=1, keepdims=True), _NORM_EPS)
    wn = weight / jnp.maximum(
        jnp.linalg.norm(weight, axis=1, keepdims=True), _NORM_EPS)
    cosine = fn @ wn.T
    sine = jnp.sqrt(jnp.clip(1.0 - cosine ** 2, 0.0, 1.0))
    cos_m, sin_m = math.cos(m), math.sin(m)
    th, mm = math.cos(math.pi - m), math.sin(math.pi - m) * m
    phi = cosine * cos_m - sine * sin_m
    if easy_margin:
        phi = jnp.where(cosine > 0.0, phi, cosine)
    else:
        phi = jnp.where(cosine > th, phi, cosine - mm)
    one_hot = jax.nn.one_hot(label, cosine.shape[1], dtype=cosine.dtype)
    return (one_hot * phi + (1.0 - one_hot) * cosine) * s


if __name__ == "__main__":
    key = jax.random.PRNGKey(0)
    k1, k2, k3 = jax.random.split(key, 3)

    B, D, C = 8, 32, 16  # batch=8, in_features=32, out_features=16
    feature = jax.random.normal(k1, (B, D), dtype=jnp.float32)
    # Xavier-uniform init of the (out_features, in_features) weight.
    bound = math.sqrt(6.0 / (D + C))
    weight = jax.random.uniform(k2, (C, D), jnp.float32, -bound, bound)
    label = jax.random.randint(k3, (B,), 0, C, dtype=jnp.int32)

    out = arcface(feature, weight, label, s=30.0, m=0.5, easy_margin=False)
    jax.block_until_ready(out)

    ref = _reference(feature, weight, label, s=30.0, m=0.5, easy_margin=False)
    assert out.shape == (B, C)
    assert jnp.allclose(out, ref, atol=1e-4, rtol=1e-4), (out, ref)

    print("KERNEL_OK")
</pallas_src>

<mosaic_0001>
module attributes {stable_mosaic.version = 11 : i64} {
  func.func @_arcface_kernel(%arg0: i32, %arg1: i32, %arg2: memref<8x32xf32, #tpu.memory_space<vmem>>, %arg3: memref<16x32xf32, #tpu.memory_space<vmem>>, %arg4: memref<8x1xi32, #tpu.memory_space<vmem>>, %arg5: memref<8x16xf32, #tpu.memory_space<vmem>>) attributes {dimension_semantics = [#tpu.dimension_semantics<parallel>, #tpu.dimension_semantics<parallel>], iteration_bounds = array<i64: 1, 1>, scalar_prefetch = 0 : i64, scratch_operands = 0 : i64, tpu.core_type = #tpu.core_type<tc>, window_params = [{transform_indices = @transform_0, window_bounds = array<i64: 8, 32>}, {transform_indices = @transform_1, window_bounds = array<i64: 16, 32>}, {transform_indices = @transform_2, window_bounds = array<i64: 8, 1>}, {transform_indices = @transform_3, window_bounds = array<i64: 8, 16>}]} {
    %c0 = arith.constant 0 : index
    %c0_0 = arith.constant 0 : index
    %0 = vector.load %arg2[%c0, %c0_0] : memref<8x32xf32, #tpu.memory_space<vmem>>, vector<8x32xf32>
    %c0_1 = arith.constant 0 : index
    %c0_2 = arith.constant 0 : index
    %1 = vector.load %arg3[%c0_1, %c0_2] : memref<16x32xf32, #tpu.memory_space<vmem>>, vector<16x32xf32>
    %2 = arith.mulf %0, %0 : vector<8x32xf32>
    %cst = arith.constant dense<0.000000e+00> : vector<8xf32>
    %3 = vector.multi_reduction <add>, %2, %cst [1] : vector<8x32xf32> to vector<8xf32>
    %4 = vector.shape_cast %3 : vector<8xf32> to vector<8x1xf32>
    %5 = math.sqrt %4 : vector<8x1xf32>
    %6 = arith.mulf %1, %1 : vector<16x32xf32>
    %cst_3 = arith.constant dense<0.000000e+00> : vector<16xf32>
    %7 = vector.multi_reduction <add>, %6, %cst_3 [1] : vector<16x32xf32> to vector<16xf32>
    %8 = vector.shape_cast %7 : vector<16xf32> to vector<16x1xf32>
    %9 = math.sqrt %8 : vector<16x1xf32>
    %cst_4 = arith.constant 9.99999996E-13 : f32
    %10 = vector.broadcast %cst_4 : f32 to vector<8x1xf32>
    %11 = arith.maximumf %5, %10 : vector<8x1xf32>
    %12 = tpu.reciprocal %11 : vector<8x1xf32> -> vector<8x1xf32>
    %13 = vector.broadcast %12 : vector<8x1xf32> to vector<8x32xf32>
    %14 = arith.mulf %0, %13 : vector<8x32xf32>
    %cst_5 = arith.constant 9.99999996E-13 : f32
    %15 = vector.broadcast %cst_5 : f32 to vector<16x1xf32>
    %16 = arith.maximumf %9, %15 : vector<16x1xf32>
    %17 = tpu.reciprocal %16 : vector<16x1xf32> -> vector<16x1xf32>
    %18 = vector.broadcast %17 : vector<16x1xf32> to vector<16x32xf32>
    %19 = arith.mulf %1, %18 : vector<16x32xf32>
    %cst_6 = arith.constant dense<0.000000e+00> : vector<8x16xf32>
    %20 = tpu.matmul %14, %19, %cst_6 {dimension_numbers = #tpu.dot_dimension_numbers<[1], [1], [0], [0], [0, 0, 1, 0], [], []>} : vector<8x32xf32>, vector<16x32xf32>, vector<8x16xf32> -> vector<8x16xf32>
    %21 = arith.mulf %20, %20 : vector<8x16xf32>
    %cst_7 = arith.constant 1.000000e+00 : f32
    %22 = vector.broadcast %cst_7 : f32 to vector<8x16xf32>
    %23 = arith.subf %22, %21 : vector<8x16xf32>
    %cst_8 = arith.constant 0.000000e+00 : f32
    %cst_9 = arith.constant 1.000000e+00 : f32
    %24 = vector.broadcast %cst_8 : f32 to vector<8x16xf32>
    %25 = arith.maximumf %24, %23 : vector<8x16xf32>
    %26 = vector.broadcast %cst_9 : f32 to vector<8x16xf32>
    %27 = arith.minimumf %26, %25 : vector<8x16xf32>
    %28 = math.sqrt %27 : vector<8x16xf32>
    %cst_10 = arith.constant 0.87758255 : f32
    %29 = vector.broadcast %cst_10 : f32 to vector<8x16xf32>
    %30 = arith.mulf %20, %29 : vector<8x16xf32>
    %cst_11 = arith.constant 0.47942555 : f32
    %31 = vector.broadcast %cst_11 : f32 to vector<8x16xf32>
    %32 = arith.mulf %28, %31 : vector<8x16xf32>
    %33 = arith.subf %30, %32 : vector<8x16xf32>
    %cst_12 = arith.constant -0.87758255 : f32
    %34 = vector.broadcast %cst_12 : f32 to vector<8x16xf32>
    %35 = arith.cmpf ogt, %20, %34 : vector<8x16xf32>
    %cst_13 = arith.constant 0.239712775 : f32
    %36 = vector.broadcast %cst_13 : f32 to vector<8x16xf32>
    %37 = arith.subf %20, %36 : vector<8x16xf32>
    %38 = arith.select %35, %33, %37 : vector<8x16xi1>, vector<8x16xf32>
    %c16_i32 = arith.constant 16 : i32
    %39 = arith.muli %arg1, %c16_i32 : i32
    %40 = tpu.iota {dimensions = array<i32: 1>} : vector<8x16xi32>
    %41 = vector.broadcast %39 : i32 to vector<8x16xi32>
    %42 = arith.addi %41, %40 : vector<8x16xi32>
    %c0_14 = arith.constant 0 : index
    %c0_15 = arith.constant 0 : index
    %43 = vector.load %arg4[%c0_14, %c0_15] : memref<8x1xi32, #tpu.memory_space<vmem>>, vector<8x1xi32>
    %44 = vector.broadcast %43 : vector<8x1xi32> to vector<8x16xi32>
    %45 = arith.cmpi eq, %42, %44 : vector<8x16xi32>
    %46 = arith.select %45, %38, %20 : vector<8x16xi1>, vector<8x16xf32>
    %cst_16 = arith.constant 3.000000e+01 : f32
    %47 = vector.broadcast %cst_16 : f32 to vector<8x16xf32>
    %48 = arith.mulf %46, %47 : vector<8x16xf32>
    %c0_17 = arith.constant 0 : index
    %c0_18 = arith.constant 0 : index
    %49 = vector.load %arg5[%c0_17, %c0_18] : memref<8x16xf32, #tpu.memory_space<vmem>>, vector<8x16xf32>
    tpu.vector_store %arg5[%c0_17, %c0_18], %48 {strides = array<i32>} : memref<8x16xf32, #tpu.memory_space<vmem>>, vector<8x16xf32>,
    return
  }
  func.func @transform_0(%arg0: i32, %arg1: i32) -> (i32, i32) {
    %c0_i32 = arith.constant 0 : i32
    %c0_i32_0 = arith.constant 0 : i32
    return %arg0, %c0_i32 : i32, i32
  }
  func.func @transform_1(%arg0: i32, %arg1: i32) -> (i32, i32) {
    %c0_i32 = arith.constant 0 : i32
    %c0_i32_0 = arith.constant 0 : i32
    return %arg1, %c0_i32 : i32, i32
  }
  func.func @transform_2(%arg0: i32, %arg1: i32) -> (i32, i32) {
    %c0_i32 = arith.constant 0 : i32
    %c0_i32_0 = arith.constant 0 : i32
    return %arg0, %c0_i32 : i32, i32
  }
  func.func @transform_3(%arg0: i32, %arg1: i32) -> (i32, i32) {
    %c0_i32 = arith.constant 0 : i32
    return %arg0, %arg1 : i32, i32
  }
}

</mosaic_0001>

<llo_original>
// kernel: tpu_custom_call.1
$region0: #{tpu_custom_call.1}
  #allocation0 [shape = 'u32[]', space=smem, size = 0x4, offset = 0x4, fixed_abs, tag = 'smem constant byte address 0x4 - core index']
  #allocation1 [shape = 'u32[144,128]{1,0:T(1,128)}', space=vmem, size = 0x12000, scoped, tag = 'internal scratch']
  %s0 = inlined_call_operand.vmem [shape: f32[8,32], index: 0, kind: input, shape index: {}]
  %s1 = inlined_call_operand.hbm [shape: f32[16,32], index: 1, kind: input, shape index: {}]
  %s2 = inlined_call_operand.vmem [shape: s32[8,1], index: 2, kind: input, shape index: {}]
  %s3 = inlined_call_operand.hbm [shape: f32[8,16], index: 3, kind: output, shape index: {}]
  %s4 = sld [smem:[#allocation0]]
  $region26: #{tpu_custom_call.1} parent=0
    _
  %s6 = ssub.s32 1, %s4
  %s7 = scalar_select 0, %s6, %s4
  $region1: #{tpu_custom_call.1} parent=0
    #allocation2 [shape = 'u8[8192]{0}', space=vmem, size = 0x2000, scoped, tag = 'input window, operand 1, single buffered']
    #allocation3 [shape = 's32[1]{0}', space=sflag, size = 0x4, scoped, tag = 'scoped memory for tpu_custom_call.1']
    #allocation4 [shape = 's32[1]{0}', space=sflag, size = 0x4, scoped, tag = 'scoped memory for tpu_custom_call.1']
    #allocation5 [shape = 'u8[4096]{0}', space=vmem, size = 0x1000, scoped, tag = 'output window, operand 0, single buffered']
    %8 = vsyncpa [#allocation3], 0
    %9 = vsyncpa [#allocation4], 0
    // Predicated region
    $region2: #{tpu_custom_call.1} parent=1 // pred_check
      _
    $region3: #{tpu_custom_call.1} parent=1 // pred_check_branch
      %11 = sbr.rel (0) target = $region5
    $region4: #{tpu_custom_call.1} parent=1 // pred_region
      _
    $region5: #{tpu_custom_call.1} parent=1 // pred_fallthru
      _
    // Predicated region
    $region6: #{tpu_custom_call.1} parent=1 // pred_check
      _
    $region7: #{tpu_custom_call.1} parent=1 // pred_check_branch
      %13 = sbr.rel (0) target = $region9
    $region8: #{tpu_custom_call.1} parent=1 // pred_region
      %s15 = ssub.s32 256, 256
      %16 = vsyncadd [#allocation3], %s15
      %s17 = sshll.u32 [#allocation2], 4
      %s18 = int_to_ptr.vmem [resolvable:$true] %s17
      %23 = dma.hbm_to_vmem [thread:$0]  %s1, 256, %s18, [#allocation3], 128, 128, 8
    $region9: #{tpu_custom_call.1} parent=1 // pred_fallthru
      _
    // Predicated region
    $region10: #{tpu_custom_call.1} parent=1 // pred_check
      _
    $region11: #{tpu_custom_call.1} parent=1 // pred_check_branch
      %25 = sbr.rel (0) target = $region13
    $region12: #{tpu_custom_call.1} parent=1 // pred_region
      _
    $region13: #{tpu_custom_call.1} parent=1 // pred_fallthru
      _
    // Predicated region
    $region14: #{tpu_custom_call.1} parent=1 // pred_check
      _
    $region15: #{tpu_custom_call.1} parent=1 // pred_check_branch
      %27 = sbr.rel (0) target = $region17
    $region16: #{tpu_custom_call.1} parent=1 // pred_region
      %28 = dma.done [#allocation3], 256
    $region17: #{tpu_custom_call.1} parent=1 // pred_fallthru
      _
    %v29 = vld [vmem:[%s0] sm:$0xff]
    %v30 = vld [vmem:[#allocation2] sm:$0xff]
    %v31 = vld [vmem:[#allocation2 + $0x8] sm:$0xff]
    %v32 = vmul.f32 %v29, %v29
    %vm33 = vcmask 261120
    %v34 = vsel %vm33, %v32, 0.0
    %35 = vadd.xlane.f32.xlu0 %v34
    %v36 = vpop.xlane.xlu0 %35
    %v37 = vrsqrt.pop %v36
    %v38 = vmul.f32 %v36, %v37
    %vm39 = vcmp.eq.f32.partialorder %v36, inf
    %v40 = vsel %vm39, %v36, %v38
    %vm41 = vcmp.eq.f32.partialorder %v36, 0.0
    %v42 = vand.u32 %v36, 2147483648
    %v43 = vsel %vm41, %v42, %v40
    %v44 = vmul.f32 %v30, %v30
    %v45 = vmul.f32 %v31, %v31
    %v46 = vsel %vm33, %v44, 0.0
    %47 = vadd.xlane.f32.xlu0 %v46
    %v48 = vpop.xlane.xlu0 %47
    %v49 = vsel %vm33, %v45, 0.0
    %50 = vadd.xlane.f32.xlu0 %v49
    %v51 = vpop.xlane.xlu0 %50
    %v52 = vrsqrt.pop %v48
    %v53 = vmul.f32 %v48, %v52
    %vm54 = vcmp.eq.f32.partialorder %v48, inf
    %v55 = vsel %vm54, %v48, %v53
    %vm56 = vcmp.eq.f32.partialorder %v48, 0.0
    %v57 = vand.u32 %v48, 2147483648
    %v58 = vsel %vm56, %v57, %v55
    %v59 = vrsqrt.pop %v51
    %v60 = vmul.f32 %v51, %v59
    %vm61 = vcmp.eq.f32.partialorder %v51, inf
    %v62 = vsel %vm61, %v51, %v60
    %vm63 = vcmp.eq.f32.partialorder %v51, 0.0
    %v64 = vand.u32 %v51, 2147483648
    %v65 = vsel %vm63, %v64, %v62
    %v66 = vmax.f32 %v43, 1e-12
    %v67 = vrcp.pop %v66
    %v68 = vmul.f32 %v29, %v67
    %v69 = vmax.f32 %v58, 1e-12
    %v70 = vmax.f32 %v65, 1e-12
    %v71 = vrcp.pop %v69
    %v72 = vrcp.pop %v70
    %v73 = vmul.f32 %v30, %v71
    %v74 = vmul.f32 %v31, %v72
    %v76 = vsel %vm33, %v68, 0
    %v79 = vsel %vm33, %v73, 0
    %v82 = vsel %vm33, %v74, 0
    %84 = vmatprep.subr.mxu0 0.0
    %85 = vmatpush1.xpose.msra.mxu0 0.0
    %86 = vmatprep.subr.mxu0 0.0
    %87 = vmatpush1.xpose.msra.mxu0 0.0
    %88 = vmatprep.subr.mxu0 0.0
    %89 = vmatpush1.xpose.msra.mxu0 0.0
    %90 = vmatprep.subr.mxu0 0.0
    %91 = vmatpush1.xpose.msra.mxu0 0.0
    %92 = vmatprep.subr.mxu0 0.0
    %93 = vmatpush1.xpose.msra.mxu0 0.0
    %94 = vmatprep.subr.mxu0 0.0
    %95 = vmatpush1.xpose.msra.mxu0 0.0
    %96 = vmatprep.subr.mxu0 0.0
    %97 = vmatpush1.xpose.msra.mxu0 0.0
    %98 = vmatprep.subr.mxu0 0.0
    %99 = vmatpush1.xpose.msra.mxu0 0.0
    %100 = vmatprep.subr.mxu0 0.0
    %101 = vmatpush1.xpose.msra.mxu0 0.0
    %102 = vmatprep.subr.mxu0 0.0
    %103 = vmatpush1.xpose.msra.mxu0 0.0
    %104 = vmatprep.subr.mxu0 0.0
    %105 = vmatpush1.xpose.msra.mxu0 0.0
    %106 = vmatprep.subr.mxu0 0.0
    %107 = vmatpush1.xpose.msra.mxu0 0.0
    %108 = vmatprep.subr.mxu0 0.0
    %109 = vmatpush1.xpose.msra.mxu0 0.0
    %110 = vmatprep.subr.mxu0 0.0
    %111 = vmatpush1.xpose.msra.mxu0 0.0
    %112 = vmatprep.subr.mxu0 0.0
    %113 = vmatpush1.xpose.msra.mxu0 %v82
    %114 = vmatprep.subr.mxu0 0.0
    %115 = vmatpush1.xpose.msra.mxu0 %v79
    %116 = vmatprep.subr.mxu0 0.0
    %117 = vmatpush2.xpose.msra.mxu0 0.0
    %118 = vmatprep.subr.mxu0 0.0
    %119 = vmatpush2.xpose.msra.mxu0 0.0
    %120 = vmatprep.subr.mxu0 0.0
    %121 = vmatpush2.xpose.msra.mxu0 0.0
    %122 = vmatprep.subr.mxu0 0.0
    %123 = vmatpush2.xpose.msra.mxu0 0.0
    %124 = vmatprep.subr.mxu0 0.0
    %125 = vmatpush2.xpose.msra.mxu0 0.0
    %126 = vmatprep.subr.mxu0 0.0
    %127 = vmatpush2.xpose.msra.mxu0 0.0
    %128 = vmatprep.subr.mxu0 0.0
    %129 = vmatpush2.xpose.msra.mxu0 0.0
    %130 = vmatprep.subr.mxu0 0.0
    %131 = vmatpush2.xpose.msra.mxu0 0.0
    %132 = vmatprep.subr.mxu0 0.0
    %133 = vmatpush2.xpose.msra.mxu0 0.0
    %134 = vmatprep.subr.mxu0 0.0
    %135 = vmatpush2.xpose.msra.mxu0 0.0
    %136 = vmatprep.subr.mxu0 0.0
    %137 = vmatpush2.xpose.msra.mxu0 0.0
    %138 = vmatprep.subr.mxu0 0.0
    %139 = vmatpush2.xpose.msra.mxu0 0.0
    %140 = vmatprep.subr.mxu0 0.0
    %141 = vmatpush2.xpose.msra.mxu0 0.0
    %142 = vmatprep.subr.mxu0 0.0
    %143 = vmatpush2.xpose.msra.mxu0 0.0
    %144 = vmatprep.subr.mxu0 0.0
    %145 = vmatpush2.xpose.msra.mxu0 0.0
    %146 = vmatprep.subr.mxu0 0.0
    %147 = vmatpush2.xpose.msra.mxu0 0.0
    %148 = vmatprep.mubr.f32.mxu0 0.0
    %149 = vmatmul.mubr.f32.gmra.mxu0 %v76
    %v150 = vpop.f32.mrf.mxu0
    %v151 = vadd.f32 0.0, %v150
    %v152 = vpop.f32.mrf.mxu0
    %153 = vdwg.mxu0
    %v154 = vmul.f32 %v151, %v151
    %v155 = vsub.f32 1.0, %v154
    %v156 = vmax.f32 %v155, 0.0
    %v157 = vmin.f32 %v156, 1.0
    %v158 = vrsqrt.pop %v157
    %v159 = vmul.f32 %v157, %v158
    %vm160 = vcmp.eq.f32.partialorder %v157, inf
    %v161 = vsel %vm160, %v157, %v159
    %vm162 = vcmp.eq.f32.partialorder %v157, 0.0
    %v163 = vand.u32 %v157, 2147483648
    %v164 = vsel %vm162, %v163, %v161
    %v165 = vmul.f32 %v151, 0.87758255
    %v166 = vmul.f32 %v164, 0.47942555
    %v167 = vsub.f32 %v165, %v166
    %vm168 = vcmp.gt.f32.partialorder %v151, -0.87758255
    %v169 = vsub.f32 %v151, 0.23971277
    %v170 = vsel %vm168, %v167, %v169
    %s171 = smul.u32 0, 16
    %v172 = vlaneseq
    %v173 = vand.u32 %v172, 127
    %v174 = vstv %s171
    %v175 = vadd.s32 %v174, %v173
    %v176 = vld [vmem:[%s2] sm:$0xff]
    %177 = vset.pattern.permute.xlu0 0
    %178 = vperm.xlu0 %177, %v176
    %v179 = vpop.permute.xlu0 %178
    %vm180 = vcmp.eq.s32.totalorder %v175, %v179
    %v181 = vsel %vm180, %v170, %v151
    %v182 = vmul.f32 %v181, 30.0
    %vm183 = vcmask 130048
    %184 = vst.msk [vmem:[#allocation5] sm:$0xff] %vm183, %v182
    // Predicated region
    $region18: #{tpu_custom_call.1} parent=1 // pred_check
      _
    $region19: #{tpu_custom_call.1} parent=1 // pred_check_branch
      %186 = sbr.rel (0) target = $region21
    $region20: #{tpu_custom_call.1} parent=1 // pred_region
      %s188 = ssub.s32 128, 128
      %189 = vsyncadd [#allocation4], %s188
      %s191 = sshll.u32 [#allocation5], 4
      %s192 = int_to_ptr.vmem [resolvable:$true] %s191
      %194 = dma.vmem_to_hbm [thread:$0]  %s192, 128, %s3, [#allocation4]
    $region21: #{tpu_custom_call.1} parent=1 // pred_fallthru
      _
    // Predicated region
    $region22: #{tpu_custom_call.1} parent=1 // pred_check
      _
    $region23: #{tpu_custom_call.1} parent=1 // pred_check_branch
      %196 = sbr.rel (0) target = $region25
    $region24: #{tpu_custom_call.1} parent=1 // pred_region
      %197 = dma.done [#allocation4], 128
    $region25: #{tpu_custom_call.1} parent=1 // pred_fallthru
      _
    %198 = vsyncpa [#allocation3], 1
    %199 = vsyncpa [#allocation4], 1

</llo_original>
